<compile_context>
chip_gen: v7x
topology: tpu7x:2x2x1
jax: 0.10.0
libtpu: 0.0.40
codegen_flags: <defaults>
</compile_context>

<pallas_src>
import math

import jax
import jax.numpy as jnp
from jax.experimental import pallas as pl
from jax.experimental.pallas import tpu as pltpu  # noqa: F401  (TPU backend implicit)

B = 2            # batch
S = 8            # sequence length
E_DIM = 32       # embedding dim (module default 512; small for the demo)
MAX_LEN = 128    # module default 50000; small stand-in, semantics identical for S <= MAX_LEN
DROPOUT_P = 0.1  # nn.Dropout(p=0.1) -> identity in eval mode

LANE = 128       # TPU vreg lane width


def make_positional_encoding(max_len: int, e_dim: int) -> jnp.ndarray:
    """Builds the `pe` buffer exactly like PositionalEncoding.__init__ -> (1, max_len, e_dim)."""
    position = jnp.arange(0, max_len, dtype=jnp.float32)[:, None]
    div_term = jnp.exp(
        jnp.arange(0, e_dim, 2, dtype=jnp.float32) * (-math.log(10000.0) / e_dim))
    angles = position * div_term[None, :]              # (max_len, e_dim // 2)
    pe = jnp.zeros((max_len, e_dim), jnp.float32)
    pe = pe.at[:, 0::2].set(jnp.sin(angles))           # even columns: sin
    pe = pe.at[:, 1::2].set(jnp.cos(angles))           # odd columns: cos
    return pe[None, :, :]                              # (1, max_len, e_dim)


def pos_enc_kernel(x_ref, pe_ref, o_ref):
    # x_ref: (B, F), pe_ref: (1, F) -> sublane-broadcast add over the batch rows.
    o_ref[...] = x_ref[...] + pe_ref[...]
    # TODO(synk): dropout is identity (eval mode); training-mode dropout would need
    # pltpu.prng_seed / pltpu.prng_random_bits masking here.


def positional_encoding_forward(x: jnp.ndarray, pe: jnp.ndarray) -> jnp.ndarray:
    """x: (B, S, E); pe: (1, max_len, E) buffer. Returns x + pe[:, :S, :] (dropout=identity)."""
    b, s, e = x.shape
    flat = s * e

    # Wrapper-side layout plumbing (free): slice pe like the module (pe[:, :S, :])
    # and flatten the token dims so the kernel's last dim is lane-dense.
    x2d = x.reshape(b, flat)
    pe2d = pe[:, :s, :].reshape(1, flat).astype(x.dtype)

    # Pad the lane dim up to a multiple of 128 if needed (keeps unmasked stores).
    pad = (-flat) % LANE
    if pad:
        x2d = jnp.pad(x2d, ((0, 0), (0, pad)))
        pe2d = jnp.pad(pe2d, ((0, 0), (0, pad)))
    flat_p = flat + pad

    out2d = pl.pallas_call(
        pos_enc_kernel,
        out_shape=jax.ShapeDtypeStruct((b, flat_p), x.dtype),
        grid=(1,),  # single invocation; no per-batch grid overhead at this size
        in_specs=[
            pl.BlockSpec((b, flat_p), lambda i: (0, 0)),
            pl.BlockSpec((1, flat_p), lambda i: (0, 0)),
        ],
        out_specs=pl.BlockSpec((b, flat_p), lambda i: (0, 0)),
    )(x2d, pe2d)

    if pad:
        out2d = out2d[:, :flat]
    return out2d.reshape(b, s, e)


if __name__ == "__main__":
    key = jax.random.PRNGKey(0)
    x = jax.random.normal(key, (B, S, E_DIM), jnp.float32)
    pe = make_positional_encoding(MAX_LEN, E_DIM)

    out = positional_encoding_forward(x, pe)
    out = jax.block_until_ready(out)

    # pure-JAX reference of the module forward (eval mode)
    ref = x + pe[:, :S, :]
    assert out.shape == (B, S, E_DIM)
    assert jnp.allclose(out, ref, atol=1e-6, rtol=1e-6), "mismatch vs reference"

    print("KERNEL_OK")
</pallas_src>

<mosaic_0001>
module attributes {stable_mosaic.version = 11 : i64} {
  func.func @pos_enc_kernel(%arg0: i32, %arg1: memref<2x256xf32, #tpu.memory_space<vmem>>, %arg2: memref<1x256xf32, #tpu.memory_space<vmem>>, %arg3: memref<2x256xf32, #tpu.memory_space<vmem>>) attributes {dimension_semantics = [#tpu.dimension_semantics<arbitrary>], iteration_bounds = array<i64: 1>, scalar_prefetch = 0 : i64, scratch_operands = 0 : i64, tpu.core_type = #tpu.core_type<tc>, window_params = [{pipeline_mode = #tpu.pipeline_mode<synchronous>, transform_indices = @transform_0, window_bounds = array<i64: 2, 256>}, {pipeline_mode = #tpu.pipeline_mode<synchronous>, transform_indices = @transform_1, window_bounds = array<i64: 1, 256>}, {pipeline_mode = #tpu.pipeline_mode<synchronous>, transform_indices = @transform_2, window_bounds = array<i64: 2, 256>}]} {
    %c0 = arith.constant 0 : index
    %c0_0 = arith.constant 0 : index
    %0 = vector.load %arg1[%c0, %c0_0] : memref<2x256xf32, #tpu.memory_space<vmem>>, vector<2x256xf32>
    %c0_1 = arith.constant 0 : index
    %c0_2 = arith.constant 0 : index
    %1 = vector.load %arg2[%c0_1, %c0_2] : memref<1x256xf32, #tpu.memory_space<vmem>>, vector<1x256xf32>
    %2 = vector.broadcast %1 : vector<1x256xf32> to vector<2x256xf32>
    %3 = arith.addf %0, %2 : vector<2x256xf32>
    %c0_3 = arith.constant 0 : index
    %c0_4 = arith.constant 0 : index
    %4 = vector.load %arg3[%c0_3, %c0_4] : memref<2x256xf32, #tpu.memory_space<vmem>>, vector<2x256xf32>
    tpu.vector_store %arg3[%c0_3, %c0_4], %3 {strides = array<i32>} : memref<2x256xf32, #tpu.memory_space<vmem>>, vector<2x256xf32>,
    return
  }
  func.func @transform_0(%arg0: i32) -> (i32, i32) {
    %c0_i32 = arith.constant 0 : i32
    %c0_i32_0 = arith.constant 0 : i32
    %c0_i32_1 = arith.constant 0 : i32
    return %c0_i32, %c0_i32_0 : i32, i32
  }
  func.func @transform_1(%arg0: i32) -> (i32, i32) {
    %c0_i32 = arith.constant 0 : i32
    %c0_i32_0 = arith.constant 0 : i32
    %c0_i32_1 = arith.constant 0 : i32
    return %c0_i32, %c0_i32_0 : i32, i32
  }
  func.func @transform_2(%arg0: i32) -> (i32, i32) {
    %c0_i32 = arith.constant 0 : i32
    %c0_i32_0 = arith.constant 0 : i32
    %c0_i32_1 = arith.constant 0 : i32
    return %c0_i32, %c0_i32_0 : i32, i32
  }
}

</mosaic_0001>

<llo_original>
// kernel: tpu_custom_call.1
$region0: #{tpu_custom_call.1}
  #allocation0 [shape = 'u32[]', space=smem, size = 0x4, offset = 0x4, fixed_abs, tag = 'smem constant byte address 0x4 - core index']
  #allocation1 [shape = 'u32[144,128]{1,0:T(1,128)}', space=vmem, size = 0x12000, scoped, tag = 'internal scratch']
  %s0 = inlined_call_operand.hbm [shape: f32[2,256], index: 0, kind: input, shape index: {}]
  %s1 = inlined_call_operand.vmem [shape: f32[1,256], index: 1, kind: input, shape index: {}]
  %s2 = inlined_call_operand.hbm [shape: f32[2,256], index: 2, kind: output, shape index: {}]
  %s3 = sld [smem:[#allocation0]]
  $region22: #{tpu_custom_call.1} parent=0
    _
  %s5 = ssub.s32 1, %s3
  %s6 = scalar_select 0, %s5, %s3
  $region1: #{tpu_custom_call.1} parent=0
    #allocation2 [shape = 'u8[2048]{0}', space=vmem, size = 0x800, scoped, tag = 'input window, operand 0, single buffered']
    #allocation3 [shape = 's32[1]{0}', space=sflag, size = 0x4, scoped, tag = 'scoped memory for tpu_custom_call.1']
    #allocation4 [shape = 's32[1]{0}', space=sflag, size = 0x4, scoped, tag = 'scoped memory for tpu_custom_call.1']
    #allocation5 [shape = 'u8[2048]{0}', space=vmem, size = 0x800, scoped, tag = 'output window, operand 0, single buffered']
    %7 = vsyncpa [#allocation3], 0
    %8 = vsyncpa [#allocation4], 0
    // Predicated region
    $region2: #{tpu_custom_call.1} parent=1 // pred_check
      _
    $region3: #{tpu_custom_call.1} parent=1 // pred_check_branch
      %10 = sbr.rel (0) target = $region5
    $region4: #{tpu_custom_call.1} parent=1 // pred_region
      %s12 = ssub.s32 64, 64
      %13 = vsyncadd [#allocation3], %s12
      %s15 = sshll.u32 [#allocation2], 4
      %s16 = int_to_ptr.vmem [resolvable:$true] %s15
      %18 = dma.hbm_to_vmem [thread:$0]  %s0, 64, %s16, [#allocation3]
    $region5: #{tpu_custom_call.1} parent=1 // pred_fallthru
      _
    // Predicated region
    $region6: #{tpu_custom_call.1} parent=1 // pred_check
      _
    $region7: #{tpu_custom_call.1} parent=1 // pred_check_branch
      %20 = sbr.rel (0) target = $region9
    $region8: #{tpu_custom_call.1} parent=1 // pred_region
      _
    $region9: #{tpu_custom_call.1} parent=1 // pred_fallthru
      _
    // Predicated region
    $region10: #{tpu_custom_call.1} parent=1 // pred_check
      _
    $region11: #{tpu_custom_call.1} parent=1 // pred_check_branch
      %22 = sbr.rel (0) target = $region13
    $region12: #{tpu_custom_call.1} parent=1 // pred_region
      %23 = dma.done [#allocation3], 64
    $region13: #{tpu_custom_call.1} parent=1 // pred_fallthru
      _
    %v24 = vld [vmem:[#allocation2] sm:$0xf]
    %v25 = vld [vmem:[%s1] sm:$0x3]
    %v27 = vlaneseq
    %v28 = vshrl.u32 %v27, 7
    %v29 = vsub.s32 0, %v28
    %v30 = vrot.slane %v25, %v29
    %v31 = vlaneseq
    %v32 = vshrl.u32 %v31, 7
    %v33 = vsub.s32 1, %v32
    %v34 = vrot.slane %v25, %v33
    %v35 = vcombine.low %v30, %v34
    %v37 = vunpack.c.l.s4 1983009808
    %v38 = vunpack.c.0.s8 %v37
    %v39 = vlaneseq
    %v40 = vshrl.u32 %v39, 7
    %v41 = vsub.s32 %v38, %v40
    %v42 = vrot.slane %v35, %v41
    %v44 = vadd.f32 %v24, %v42
    %45 = vst [vmem:[#allocation5] sm:$0xf] %v44
    // Predicated region
    $region14: #{tpu_custom_call.1} parent=1 // pred_check
      _
    $region15: #{tpu_custom_call.1} parent=1 // pred_check_branch
      %47 = sbr.rel (0) target = $region17
    $region16: #{tpu_custom_call.1} parent=1 // pred_region
      %s49 = ssub.s32 64, 64
      %50 = vsyncadd [#allocation4], %s49
      %s52 = sshll.u32 [#allocation5], 4
      %s53 = int_to_ptr.vmem [resolvable:$true] %s52
      %55 = dma.vmem_to_hbm [thread:$0]  %s53, 64, %s2, [#allocation4]
    $region17: #{tpu_custom_call.1} parent=1 // pred_fallthru
      _
    // Predicated region
    $region18: #{tpu_custom_call.1} parent=1 // pred_check
      _
    $region19: #{tpu_custom_call.1} parent=1 // pred_check_branch
      %57 = sbr.rel (0) target = $region21
    $region20: #{tpu_custom_call.1} parent=1 // pred_region
      %58 = dma.done [#allocation4], 64
    $region21: #{tpu_custom_call.1} parent=1 // pred_fallthru
      _
    %59 = vsyncpa [#allocation3], 1
    %60 = vsyncpa [#allocation4], 1

</llo_original>
